<compile_context>
chip_gen: v7x
topology: tpu7x:2x2x1
jax: 0.10.0
libtpu: 0.0.40
codegen_flags: <defaults>
</compile_context>

<pallas_src>
import numpy as np
import jax
import jax.numpy as jnp
from jax.experimental import pallas as pl
from jax.experimental.pallas import tpu as pltpu

KERNEL_SIZE = 7
NUM_FILTERS = 32
HIDDEN = 100
NEG_SLOPE = 0.01  # F.leaky_relu default


def _round_up(x, m):
    return ((x + m - 1) // m) * m


def _leaky(v):
    return jnp.where(v > 0, v, NEG_SLOPE * v)


def cnn_kernel(p_ref, wbig_ref, bc_ref, w1_ref, b1_ref, w2_ref, b2_ref, o_ref):
    """Fused conv1d + fc1 + fc2 forward for one batch tile.

    p_ref:    (TN, Lout*CK_pad)      flattened im2col patches (lane-dense)
    wbig_ref: (Lout*CK_pad, Lout*F)  block-diagonal conv weight
    bc_ref:   (1, Lout*F)            conv bias tiled over time
    w1_ref:   (Lout*F, H_pad)        fc1 weight, permuted to match the time-major conv layout
    b1_ref:   (1, H_pad)
    w2_ref:   (1, H_pad)             fc2 weight as a row (VPU path)
    b2_ref:   (1, 1)
    o_ref:    (TN, 1)
    """
    # conv1d as one big lane-dense MXU matmul, bias + leaky fused on the VPU.
    conv = jnp.dot(p_ref[...], wbig_ref[...], preferred_element_type=jnp.float32)
    conv = _leaky(conv + bc_ref[...])                      # (TN, Lout*F)

    # fc1 as a single MXU matmul over the full (Lout*F) contraction.
    h1 = jnp.dot(conv, w1_ref[...], preferred_element_type=jnp.float32)
    h1 = _leaky(h1 + b1_ref[...])                          # (TN, H_pad); padded cols stay 0

    # fc2: VPU multiply + XLU lane reduction instead of a 1-column MXU matmul.
    logit = jnp.sum(h1 * w2_ref[...], axis=-1, keepdims=True) + b2_ref[...]
    o_ref[...] = jnp.tanh(logit)


def cnn_forward(x, w_conv, b_conv, w_fc1, b_fc1, w_fc2, b_fc2, *, max_words, tile_n=512):
    """x: (N, embed_dim, L_in) with L_in = max_words + KERNEL_SIZE - 1 (NCL layout)."""
    n, c, l_in = x.shape
    k = KERNEL_SIZE
    f = NUM_FILTERS
    l_out = l_in - k + 1
    assert l_out == max_words, "conv output length must equal max_words for the view() to hold"

    ck = c * k
    ckl = l_out * ck
    ckl_pad = _round_up(ckl, 128)          # lane-dense patch rows
    lf = l_out * f                         # 256 here (lane-dense)
    h_pad = _round_up(HIDDEN, 128)         # 100 -> 128

    # ---- glue: im2col + weight re-layout (plain JAX, outside the kernel) ----
    # patches[n, t, c*K + kk] = x[n, c, t + kk]
    patches = jnp.stack([x[:, :, kk:kk + l_out] for kk in range(k)], axis=-1)   # (N, C, Lout, K)
    patches = jnp.transpose(patches, (0, 2, 1, 3)).reshape(n, l_out, ck)        # (N, Lout, CK)
    patches = patches.reshape(n, ckl)                                           # (N, Lout*CK)

    # conv weight, (c,k)-major to match the patch layout, then block-diagonal over time.
    wc = jnp.transpose(w_conv, (1, 2, 0)).reshape(ck, f).astype(jnp.float32)    # (CK, F)
    w_big = jnp.kron(jnp.eye(l_out, dtype=jnp.float32), wc)                     # (Lout*CK, Lout*F)
    bc_tiled = jnp.tile(b_conv.astype(jnp.float32), l_out).reshape(1, lf)       # (1, Lout*F)

    # PyTorch flattens conv output (N, F, Lout) -> f*Lout + t; our conv columns are t*F + f.
    w1p = jnp.transpose(w_fc1.reshape(HIDDEN, f, l_out), (2, 1, 0)).reshape(lf, HIDDEN)
    w1p = jnp.pad(w1p.astype(jnp.float32), ((0, 0), (0, h_pad - HIDDEN)))       # (Lout*F, H_pad)
    b1p = jnp.pad(b_fc1.astype(jnp.float32), (0, h_pad - HIDDEN)).reshape(1, h_pad)
    w2row = jnp.pad(w_fc2.reshape(1, HIDDEN).astype(jnp.float32),
                    ((0, 0), (0, h_pad - HIDDEN)))                              # (1, H_pad)
    b2p = b_fc2.reshape(1, 1).astype(jnp.float32)

    # Batch tiling: TN multiple of 8, sized well under every generation's scoped VMEM.
    tn = min(tile_n, _round_up(n, 8))
    n_pad = _round_up(n, tn)
    patches_flat = jnp.pad(patches.astype(jnp.float32),
                           ((0, n_pad - n), (0, ckl_pad - ckl)))                # (N_pad, CKL_pad)
    w_big = jnp.pad(w_big, ((0, ckl_pad - ckl), (0, 0)))                        # (CKL_pad, Lout*F)

    grid = (n_pad // tn,)
    out = pl.pallas_call(
        cnn_kernel,
        out_shape=jax.ShapeDtypeStruct((n_pad, 1), jnp.float32),
        grid_spec=pltpu.PrefetchScalarGridSpec(
            num_scalar_prefetch=0,
            grid=grid,
            in_specs=[
                pl.BlockSpec((tn, ckl_pad), lambda i: (i, 0)),   # patches: streamed per batch tile
                pl.BlockSpec((ckl_pad, lf), lambda i: (0, 0)),   # conv weight: resident
                pl.BlockSpec((1, lf), lambda i: (0, 0)),         # conv bias: resident
                pl.BlockSpec((lf, h_pad), lambda i: (0, 0)),     # fc1 weight: resident
                pl.BlockSpec((1, h_pad), lambda i: (0, 0)),      # fc1 bias: resident
                pl.BlockSpec((1, h_pad), lambda i: (0, 0)),      # fc2 weight row: resident
                pl.BlockSpec((1, 1), lambda i: (0, 0)),          # fc2 bias: resident
            ],
            out_specs=pl.BlockSpec((tn, 1), lambda i: (i, 0)),
        ),
        compiler_params=pltpu.CompilerParams(
            dimension_semantics=("parallel",),   # shards the batch grid across TCs on v7x
        ),
    )(patches_flat, w_big, bc_tiled, w1p, b1p, w2row, b2p)
    return out[:n]


def reference_forward(x, w_conv, b_conv, w_fc1, b_fc1, w_fc2, b_fc2, *, max_words):
    """Pure-JAX re-statement of the PyTorch forward (for verification)."""
    n, c, l_in = x.shape
    k = KERNEL_SIZE
    l_out = l_in - k + 1
    cols = jnp.stack([x[:, :, kk:kk + l_out] for kk in range(k)], axis=-1)      # (N, C, Lout, K)
    conv = jnp.einsum('ncmk,fck->nfm', cols, w_conv) + b_conv[None, :, None]    # (N, F, Lout)
    conv = _leaky(conv)
    flat = conv.reshape(n, NUM_FILTERS * max_words)                             # x.view(-1, fc_dim)
    h1 = _leaky(flat @ w_fc1.T + b_fc1)
    return jnp.tanh(h1 @ w_fc2.T + b_fc2)


if __name__ == "__main__":
    embed_dim = 16
    max_words = 8
    batch = 16
    l_in = max_words + KERNEL_SIZE - 1  # so that conv output length == max_words

    key = jax.random.PRNGKey(0)
    kx, kwc, kbc, kw1, kb1, kw2, kb2 = jax.random.split(key, 7)

    fc_dim = max_words * NUM_FILTERS

    x = jax.random.normal(kx, (batch, embed_dim, l_in), dtype=jnp.float32)

    # Deterministic parameter init (uniform, PyTorch-like fan-in scaling).
    s_conv = 1.0 / np.sqrt(embed_dim * KERNEL_SIZE)
    s_fc1 = 1.0 / np.sqrt(fc_dim)
    s_fc2 = 1.0 / np.sqrt(HIDDEN)
    w_conv = jax.random.uniform(kwc, (NUM_FILTERS, embed_dim, KERNEL_SIZE),
                                minval=-s_conv, maxval=s_conv, dtype=jnp.float32)
    b_conv = jax.random.uniform(kbc, (NUM_FILTERS,), minval=-s_conv, maxval=s_conv,
                                dtype=jnp.float32)
    w_fc1 = jax.random.uniform(kw1, (HIDDEN, fc_dim), minval=-s_fc1, maxval=s_fc1,
                               dtype=jnp.float32)
    b_fc1 = jax.random.uniform(kb1, (HIDDEN,), minval=-s_fc1, maxval=s_fc1,
                               dtype=jnp.float32)
    w_fc2 = jax.random.uniform(kw2, (1, HIDDEN), minval=-s_fc2, maxval=s_fc2,
                               dtype=jnp.float32)
    b_fc2 = jax.random.uniform(kb2, (1,), minval=-s_fc2, maxval=s_fc2, dtype=jnp.float32)

    # tile_n=8 here so the small demo batch actually exercises a multi-step pipelined grid.
    out = cnn_forward(x, w_conv, b_conv, w_fc1, b_fc1, w_fc2, b_fc2,
                      max_words=max_words, tile_n=8)
    out = jax.block_until_ready(out)

    ref = reference_forward(x, w_conv, b_conv, w_fc1, b_fc1, w_fc2, b_fc2, max_words=max_words)
    np.testing.assert_allclose(np.asarray(out), np.asarray(ref), rtol=1e-5, atol=1e-5)

    print("KERNEL_OK")
</pallas_src>

<mosaic_0001>
module attributes {stable_mosaic.version = 11 : i64} {
  func.func @cnn_kernel(%arg0: i32, %arg1: memref<8x896xf32, #tpu.memory_space<vmem>>, %arg2: memref<896x256xf32, #tpu.memory_space<vmem>>, %arg3: memref<1x256xf32, #tpu.memory_space<vmem>>, %arg4: memref<256x128xf32, #tpu.memory_space<vmem>>, %arg5: memref<1x128xf32, #tpu.memory_space<vmem>>, %arg6: memref<1x128xf32, #tpu.memory_space<vmem>>, %arg7: memref<1x1xf32, #tpu.memory_space<vmem>>, %arg8: memref<8x1xf32, #tpu.memory_space<vmem>>) attributes {dimension_semantics = [#tpu.dimension_semantics<parallel>], iteration_bounds = array<i64: 2>, scalar_prefetch = 0 : i64, scratch_operands = 0 : i64, tpu.core_type = #tpu.core_type<tc>, window_params = [{transform_indices = @transform_0, window_bounds = array<i64: 8, 896>}, {pipeline_mode = #tpu.pipeline_mode<synchronous>, transform_indices = @transform_1, window_bounds = array<i64: 896, 256>}, {pipeline_mode = #tpu.pipeline_mode<synchronous>, transform_indices = @transform_2, window_bounds = array<i64: 1, 256>}, {pipeline_mode = #tpu.pipeline_mode<synchronous>, transform_indices = @transform_3, window_bounds = array<i64: 256, 128>}, {pipeline_mode = #tpu.pipeline_mode<synchronous>, transform_indices = @transform_4, window_bounds = array<i64: 1, 128>}, {pipeline_mode = #tpu.pipeline_mode<synchronous>, transform_indices = @transform_5, window_bounds = array<i64: 1, 128>}, {pipeline_mode = #tpu.pipeline_mode<synchronous>, transform_indices = @transform_6, window_bounds = array<i64: 1, 1>}, {transform_indices = @transform_7, window_bounds = array<i64: 8, 1>}]} {
    %c0 = arith.constant 0 : index
    %c0_0 = arith.constant 0 : index
    %0 = vector.load %arg1[%c0, %c0_0] : memref<8x896xf32, #tpu.memory_space<vmem>>, vector<8x896xf32>
    %c0_1 = arith.constant 0 : index
    %c0_2 = arith.constant 0 : index
    %1 = vector.load %arg2[%c0_1, %c0_2] : memref<896x256xf32, #tpu.memory_space<vmem>>, vector<896x256xf32>
    %cst = arith.constant dense<0.000000e+00> : vector<8x256xf32>
    %2 = tpu.matmul %0, %1, %cst {dimension_numbers = #tpu.dot_dimension_numbers<[1], [0], [0], [1], [0, 0, 1, 1], [], []>} : vector<8x896xf32>, vector<896x256xf32>, vector<8x256xf32> -> vector<8x256xf32>
    %c0_3 = arith.constant 0 : index
    %c0_4 = arith.constant 0 : index
    %3 = vector.load %arg3[%c0_3, %c0_4] : memref<1x256xf32, #tpu.memory_space<vmem>>, vector<1x256xf32>
    %4 = vector.broadcast %3 : vector<1x256xf32> to vector<8x256xf32>
    %5 = arith.addf %2, %4 : vector<8x256xf32>
    %cst_5 = arith.constant 0.000000e+00 : f32
    %6 = vector.broadcast %cst_5 : f32 to vector<8x256xf32>
    %7 = arith.cmpf ogt, %5, %6 : vector<8x256xf32>
    %cst_6 = arith.constant 0.00999999977 : f32
    %8 = vector.broadcast %cst_6 : f32 to vector<8x256xf32>
    %9 = arith.mulf %8, %5 : vector<8x256xf32>
    %10 = arith.select %7, %5, %9 : vector<8x256xi1>, vector<8x256xf32>
    %c0_7 = arith.constant 0 : index
    %c0_8 = arith.constant 0 : index
    %11 = vector.load %arg4[%c0_7, %c0_8] : memref<256x128xf32, #tpu.memory_space<vmem>>, vector<256x128xf32>
    %cst_9 = arith.constant dense<0.000000e+00> : vector<8x128xf32>
    %12 = tpu.matmul %10, %11, %cst_9 {dimension_numbers = #tpu.dot_dimension_numbers<[1], [0], [0], [1], [0, 0, 1, 1], [], []>} : vector<8x256xf32>, vector<256x128xf32>, vector<8x128xf32> -> vector<8x128xf32>
    %c0_10 = arith.constant 0 : index
    %c0_11 = arith.constant 0 : index
    %13 = vector.load %arg5[%c0_10, %c0_11] : memref<1x128xf32, #tpu.memory_space<vmem>>, vector<1x128xf32>
    %14 = vector.broadcast %13 : vector<1x128xf32> to vector<8x128xf32>
    %15 = arith.addf %12, %14 : vector<8x128xf32>
    %cst_12 = arith.constant 0.000000e+00 : f32
    %16 = vector.broadcast %cst_12 : f32 to vector<8x128xf32>
    %17 = arith.cmpf ogt, %15, %16 : vector<8x128xf32>
    %cst_13 = arith.constant 0.00999999977 : f32
    %18 = vector.broadcast %cst_13 : f32 to vector<8x128xf32>
    %19 = arith.mulf %18, %15 : vector<8x128xf32>
    %20 = arith.select %17, %15, %19 : vector<8x128xi1>, vector<8x128xf32>
    %c0_14 = arith.constant 0 : index
    %c0_15 = arith.constant 0 : index
    %21 = vector.load %arg6[%c0_14, %c0_15] : memref<1x128xf32, #tpu.memory_space<vmem>>, vector<1x128xf32>
    %22 = vector.broadcast %21 : vector<1x128xf32> to vector<8x128xf32>
    %23 = arith.mulf %20, %22 : vector<8x128xf32>
    %cst_16 = arith.constant dense<0.000000e+00> : vector<8xf32>
    %24 = vector.multi_reduction <add>, %23, %cst_16 [1] : vector<8x128xf32> to vector<8xf32>
    %25 = vector.shape_cast %24 : vector<8xf32> to vector<8x1xf32>
    %c0_17 = arith.constant 0 : index
    %c0_18 = arith.constant 0 : index
    %26 = vector.load %arg7[%c0_17, %c0_18] : memref<1x1xf32, #tpu.memory_space<vmem>>, vector<1x1xf32>
    %27 = vector.broadcast %26 : vector<1x1xf32> to vector<8x1xf32>
    %28 = arith.addf %25, %27 : vector<8x1xf32>
    %29 = math.tanh %28 : vector<8x1xf32>
    %c0_19 = arith.constant 0 : index
    %c0_20 = arith.constant 0 : index
    %30 = vector.load %arg8[%c0_19, %c0_20] : memref<8x1xf32, #tpu.memory_space<vmem>>, vector<8x1xf32>
    tpu.vector_store %arg8[%c0_19, %c0_20], %29 {strides = array<i32>} : memref<8x1xf32, #tpu.memory_space<vmem>>, vector<8x1xf32>,
    return
  }
  func.func @transform_0(%arg0: i32) -> (i32, i32) {
    %c0_i32 = arith.constant 0 : i32
    %c0_i32_0 = arith.constant 0 : i32
    return %arg0, %c0_i32 : i32, i32
  }
  func.func @transform_1(%arg0: i32) -> (i32, i32) {
    %c0_i32 = arith.constant 0 : i32
    %c0_i32_0 = arith.constant 0 : i32
    %c0_i32_1 = arith.constant 0 : i32
    return %c0_i32, %c0_i32_0 : i32, i32
  }
  func.func @transform_2(%arg0: i32) -> (i32, i32) {
    %c0_i32 = arith.constant 0 : i32
    %c0_i32_0 = arith.constant 0 : i32
    %c0_i32_1 = arith.constant 0 : i32
    return %c0_i32, %c0_i32_0 : i32, i32
  }
  func.func @transform_3(%arg0: i32) -> (i32, i32) {
    %c0_i32 = arith.constant 0 : i32
    %c0_i32_0 = arith.constant 0 : i32
    %c0_i32_1 = arith.constant 0 : i32
    return %c0_i32, %c0_i32_0 : i32, i32
  }
  func.func @transform_4(%arg0: i32) -> (i32, i32) {
    %c0_i32 = arith.constant 0 : i32
    %c0_i32_0 = arith.constant 0 : i32
    %c0_i32_1 = arith.constant 0 : i32
    return %c0_i32, %c0_i32_0 : i32, i32
  }
  func.func @transform_5(%arg0: i32) -> (i32, i32) {
    %c0_i32 = arith.constant 0 : i32
    %c0_i32_0 = arith.constant 0 : i32
    %c0_i32_1 = arith.constant 0 : i32
    return %c0_i32, %c0_i32_0 : i32, i32
  }
  func.func @transform_6(%arg0: i32) -> (i32, i32) {
    %c0_i32 = arith.constant 0 : i32
    %c0_i32_0 = arith.constant 0 : i32
    %c0_i32_1 = arith.constant 0 : i32
    return %c0_i32, %c0_i32_0 : i32, i32
  }
  func.func @transform_7(%arg0: i32) -> (i32, i32) {
    %c0_i32 = arith.constant 0 : i32
    %c0_i32_0 = arith.constant 0 : i32
    return %arg0, %c0_i32 : i32, i32
  }
}

</mosaic_0001>

<llo_original>
// kernel: tpu_custom_call.1
$region0: #{tpu_custom_call.1}
  #allocation0 [shape = 'u32[]', space=smem, size = 0x4, offset = 0x4, fixed_abs, tag = 'smem constant byte address 0x4 - core index']
  #allocation1 [shape = 'u32[144,128]{1,0:T(1,128)}', space=vmem, size = 0x12000, scoped, tag = 'internal scratch']
  #allocation2 [shape = 'f32[1,1]{1,0:T(1,128)S(1)}', space=vmem, size = 0x200, scoped, tag = 'scoped memory for tpu_custom_call.1']
  %s0 = inlined_call_operand.hbm [shape: f32[16,896], index: 0, kind: input, shape index: {}]
  %s1 = inlined_call_operand.hbm [shape: f32[896,256], index: 1, kind: input, shape index: {}]
  %s2 = inlined_call_operand.vmem [shape: f32[1,256], index: 2, kind: input, shape index: {}]
  %s3 = inlined_call_operand.hbm [shape: f32[256,128], index: 3, kind: input, shape index: {}]
  %s4 = inlined_call_operand.vmem [shape: f32[1,128], index: 4, kind: input, shape index: {}]
  %s5 = inlined_call_operand.vmem [shape: f32[1,128], index: 5, kind: input, shape index: {}]
  %s6 = inlined_call_operand.<no memory space> [shape: f32[1,1], index: 6, kind: input, shape index: {}]
  %s7 = inlined_call_operand.vmem [shape: f32[16,1], index: 7, kind: output, shape index: {}]
  %s8 = sld [smem:[#allocation0]]
  $region73: #{tpu_custom_call.1} parent=0
    _
  %s10 = ssub.s32 1, %s8
  %s11 = scalar_select 0, %s10, %s8
  %v12 = vstv %s6
  %13 = vst [vmem:[#allocation2] sm:$0x1] %v12
  $region1: #{tpu_custom_call.1} parent=0
    #allocation3 [shape = 'u8[57344]{0}', space=vmem, size = 0xe000, scoped, tag = 'input window, operand 0']
    #allocation4 [shape = 's32[2]{0}', space=sflag, size = 0x8, scoped, tag = 'scoped memory for tpu_custom_call.1']
    #allocation5 [shape = 'u8[917504]{0}', space=vmem, size = 0xe0000, scoped, tag = 'input window, operand 1, single buffered']
    #allocation6 [shape = 's32[1]{0}', space=sflag, size = 0x4, scoped, tag = 'scoped memory for tpu_custom_call.1']
    #allocation7 [shape = 'u8[131072]{0}', space=vmem, size = 0x20000, scoped, tag = 'input window, operand 3, single buffered']
    %14 = vsyncpa [#allocation4], 0
    %s15 = scalar_lea.sflag [#allocation4], 1
    %16 = vsyncpa %s15, 0
    %17 = vsyncpa [#allocation6], 0
    loop: start=0, step=1, limit=4
    $region2: #{tpu_custom_call.1} parent=1 // loop_pre_header
      _
    $region3: #{tpu_custom_call.1} parent=1 // loop_header
      %s19 = sphi 0, %s23
      %p20 = scmp.ge.s32.totalorder %s19, 4
      %s29 = sphi 0, %s31
      %s32 = sphi 0, %s29
      %s33 = sphi 0, %s32
      %s49 = sphi 0, %s33
      %s53 = sphi 0, %s53
      %s55 = sphi 0, %s53
      %s56 = sphi 0, %s55
      %s70 = sphi 0, %s56
      %s74 = sphi 0, %s74
      %s76 = sphi 0, %s74
      %s77 = sphi 0, %s76
      %s91 = sphi 0, %s77
      %s95 = sphi 0, %s95
      %s97 = sphi 0, %s95
      %s98 = sphi 0, %s97
      %s112 = sphi 0, %s98
      %s116 = sphi 0, %s116
      %s118 = sphi 0, %s116
      %s119 = sphi 0, %s118
      %s133 = sphi 0, %s119
      %s137 = sphi 0, %s137
      %s139 = sphi 0, %s137
      %s140 = sphi 0, %s139
      %s154 = sphi 0, %s140
      %s158 = sphi 0, %s158
      %s160 = sphi 0, %s158
      %s161 = sphi 0, %s160
      %s175 = sphi 0, %s161
      %s181 = sphi 0, %s183
      %s184 = sphi 0, %s181
      %s185 = sphi 0, %s184
      %s201 = sphi 0, %s185
    $region4: #{tpu_custom_call.1} parent=1 // loop_header_branch
      %22 = sbr.rel (%p20) target = $region8
    $region5: #{tpu_custom_call.1} parent=1 // loop_body
      %s24 = ssub.s32 %s19, 1
      %s25 = ssub.s32 %s19, 2
      %s26 = sadd.s32 %s19, 1
      %s27 = ssub.s32 %s19, %s26
      %p28 = scmp.eq.s32.totalorder %s27, 0
      %s30 = sadd.s32 %s29, 1
      %s31 = scalar_select %p28, %s29, %s30
      %p34 = pneg %p28
      %p35 = scmp.eq.s32.totalorder %s19, 1
      %p36 = por %p34, %p35
      %p37 = scmp.ne.s32.totalorder %s29, %s32
      %p38 = scmp.eq.s32.totalorder %s19, 0
      %p39 = por %p37, %p38
      %p40 = scmp.ne.s32.totalorder %s29, %s32
      %p41 = scmp.eq.s32.totalorder %s24, 1
      %p42 = por %p40, %p41
      %p43 = scmp.ne.s32.totalorder %s32, %s33
      %p44 = scmp.eq.s32.totalorder %s24, 0
      %p45 = por %p43, %p44
      %p46 = scmp.ne.s32.totalorder %s32, %s33
      %p47 = scmp.eq.s32.totalorder %s25, 1
      %p48 = por %p46, %p47
      %p50 = scmp.ne.s32.totalorder %s33, %s49
      %p51 = scmp.eq.s32.totalorder %s25, 0
      %p52 = por %p50, %p51
      %s54 = sadd.s32 %s53, 1
      %p57 = scmp.eq.s32.totalorder %s19, 1
      %p58 = scmp.ne.s32.totalorder %s53, %s55
      %p59 = scmp.eq.s32.totalorder %s19, 0
      %p60 = por %p58, %p59
      %p61 = scmp.ne.s32.totalorder %s53, %s55
      %p62 = scmp.eq.s32.totalorder %s24, 1
      %p63 = por %p61, %p62
      %p64 = scmp.ne.s32.totalorder %s55, %s56
      %p65 = scmp.eq.s32.totalorder %s24, 0
      %p66 = por %p64, %p65
      %p67 = scmp.ne.s32.totalorder %s55, %s56
      %p68 = scmp.eq.s32.totalorder %s25, 1
      %p69 = por %p67, %p68
      %p71 = scmp.ne.s32.totalorder %s56, %s70
      %p72 = scmp.eq.s32.totalorder %s25, 0
      %p73 = por %p71, %p72
      %s75 = sadd.s32 %s74, 1
      %p78 = scmp.eq.s32.totalorder %s19, 1
      %p79 = scmp.ne.s32.totalorder %s74, %s76
      %p80 = scmp.eq.s32.totalorder %s19, 0
      %p81 = por %p79, %p80
      %p82 = scmp.ne.s32.totalorder %s74, %s76
      %p83 = scmp.eq.s32.totalorder %s24, 1
      %p84 = por %p82, %p83
      %p85 = scmp.ne.s32.totalorder %s76, %s77
      %p86 = scmp.eq.s32.totalorder %s24, 0
      %p87 = por %p85, %p86
      %p88 = scmp.ne.s32.totalorder %s76, %s77
      %p89 = scmp.eq.s32.totalorder %s25, 1
      %p90 = por %p88, %p89
      %p92 = scmp.ne.s32.totalorder %s77, %s91
      %p93 = scmp.eq.s32.totalorder %s25, 0
      %p94 = por %p92, %p93
      %s96 = sadd.s32 %s95, 1
      %p99 = scmp.eq.s32.totalorder %s19, 1
      %p100 = scmp.ne.s32.totalorder %s95, %s97
      %p101 = scmp.eq.s32.totalorder %s19, 0
      %p102 = por %p100, %p101
      %p103 = scmp.ne.s32.totalorder %s95, %s97
      %p104 = scmp.eq.s32.totalorder %s24, 1
      %p105 = por %p103, %p104
      %p106 = scmp.ne.s32.totalorder %s97, %s98
      %p107 = scmp.eq.s32.totalorder %s24, 0
      %p108 = por %p106, %p107
      %p109 = scmp.ne.s32.totalorder %s97, %s98
      %p110 = scmp.eq.s32.totalorder %s25, 1
      %p111 = por %p109, %p110
      %p113 = scmp.ne.s32.totalorder %s98, %s112
      %p114 = scmp.eq.s32.totalorder %s25, 0
      %p115 = por %p113, %p114
      %s117 = sadd.s32 %s116, 1
      %p120 = scmp.eq.s32.totalorder %s19, 1
      %p121 = scmp.ne.s32.totalorder %s116, %s118
      %p122 = scmp.eq.s32.totalorder %s19, 0
      %p123 = por %p121, %p122
      %p124 = scmp.ne.s32.totalorder %s116, %s118
      %p125 = scmp.eq.s32.totalorder %s24, 1
      %p126 = por %p124, %p125
      %p127 = scmp.ne.s32.totalorder %s118, %s119
      %p128 = scmp.eq.s32.totalorder %s24, 0
      %p129 = por %p127, %p128
      %p130 = scmp.ne.s32.totalorder %s118, %s119
      %p131 = scmp.eq.s32.totalorder %s25, 1
      %p132 = por %p130, %p131
      %p134 = scmp.ne.s32.totalorder %s119, %s133
      %p135 = scmp.eq.s32.totalorder %s25, 0
      %p136 = por %p134, %p135
      %s138 = sadd.s32 %s137, 1
      %p141 = scmp.eq.s32.totalorder %s19, 1
      %p142 = scmp.ne.s32.totalorder %s137, %s139
      %p143 = scmp.eq.s32.totalorder %s19, 0
      %p144 = por %p142, %p143
      %p145 = scmp.ne.s32.totalorder %s137, %s139
      %p146 = scmp.eq.s32.totalorder %s24, 1
      %p147 = por %p145, %p146
      %p148 = scmp.ne.s32.totalorder %s139, %s140
      %p149 = scmp.eq.s32.totalorder %s24, 0
      %p150 = por %p148, %p149
      %p151 = scmp.ne.s32.totalorder %s139, %s140
      %p152 = scmp.eq.s32.totalorder %s25, 1
      %p153 = por %p151, %p152
      %p155 = scmp.ne.s32.totalorder %s140, %s154
      %p156 = scmp.eq.s32.totalorder %s25, 0
      %p157 = por %p155, %p156
      %s159 = sadd.s32 %s158, 1
      %p162 = scmp.eq.s32.totalorder %s19, 1
      %p163 = scmp.ne.s32.totalorder %s158, %s160
      %p164 = scmp.eq.s32.totalorder %s19, 0
      %p165 = por %p163, %p164
      %p166 = scmp.ne.s32.totalorder %s158, %s160
      %p167 = scmp.eq.s32.totalorder %s24, 1
      %p168 = por %p166, %p167
      %p169 = scmp.ne.s32.totalorder %s160, %s161
      %p170 = scmp.eq.s32.totalorder %s24, 0
      %p171 = por %p169, %p170
      %p172 = scmp.ne.s32.totalorder %s160, %s161
      %p173 = scmp.eq.s32.totalorder %s25, 1
      %p174 = por %p172, %p173
      %p176 = scmp.ne.s32.totalorder %s161, %s175
      %p177 = scmp.eq.s32.totalorder %s25, 0
      %p178 = por %p176, %p177
      %s179 = ssub.s32 %s19, %s26
      %p180 = scmp.eq.s32.totalorder %s179, 0
      %s182 = sadd.s32 %s181, 1
      %s183 = scalar_select %p180, %s181, %s182
      %p186 = pneg %p180
      %p187 = scmp.eq.s32.totalorder %s19, 1
      %p188 = por %p186, %p187
      %p189 = scmp.ne.s32.totalorder %s181, %s184
      %p190 = scmp.eq.s32.totalorder %s19, 0
      %p191 = por %p189, %p190
      %p192 = scmp.ne.s32.totalorder %s181, %s184
      %p193 = scmp.eq.s32.totalorder %s24, 1
      %p194 = por %p192, %p193
      %p195 = scmp.ne.s32.totalorder %s184, %s185
      %p196 = scmp.eq.s32.totalorder %s24, 0
      %p197 = por %p195, %p196
      %p198 = scmp.ne.s32.totalorder %s184, %s185
      %p199 = scmp.eq.s32.totalorder %s25, 1
      %p200 = por %p198, %p199
      %p202 = scmp.ne.s32.totalorder %s185, %s201
      %p203 = scmp.eq.s32.totalorder %s25, 0
      %p204 = por %p202, %p203
      %p205 = scmp.le.s32.totalorder 1, %s19
      %p206 = scmp.lt.s32.totalorder %s19, 3
      %p207 = pnand %p205, %p206
      %p208 = pneg %p207
      // Predicated region
      $region9: #{tpu_custom_call.1} parent=5 // pred_check
        _
      $region10: #{tpu_custom_call.1} parent=5 // pred_check_branch
        %210 = sbr.rel (%p207) target = $region12
      $region11: #{tpu_custom_call.1} parent=5 // pred_region
        %s211 = ssub.s32 %s19, 1
        // Predicated region
        $region13: #{tpu_custom_call.1} parent=11 // pred_check
          %p212 = pneg %p66
        $region14: #{tpu_custom_call.1} parent=11 // pred_check_branch
          %214 = sbr.rel (%p212) target = $region16
        $region15: #{tpu_custom_call.1} parent=11 // pred_region
          %s216 = ssub.s32 28672, 28672
          %217 = vsyncadd [#allocation6], %s216
          %s218 = sshll.u32 [#allocation5], 4
          %s219 = int_to_ptr.vmem [resolvable:$true] %s218
          %224 = dma.hbm_to_vmem [thread:$0]  %s1, 28672, %s219, [#allocation6], 256, 256, 16
        $region16: #{tpu_custom_call.1} parent=11 // pred_fallthru
          _
        // Predicated region
        $region17: #{tpu_custom_call.1} parent=11 // pred_check
          %p225 = pneg %p87
        $region18: #{tpu_custom_call.1} parent=11 // pred_check_branch
          %227 = sbr.rel (%p225) target = $region20
        $region19: #{tpu_custom_call.1} parent=11 // pred_region
          _
        $region20: #{tpu_custom_call.1} parent=11 // pred_fallthru
          _
        // Predicated region
        $region21: #{tpu_custom_call.1} parent=11 // pred_check
          %p228 = pneg %p108
        $region22: #{tpu_custom_call.1} parent=11 // pred_check_branch
          %230 = sbr.rel (%p228) target = $region24
        $region23: #{tpu_custom_call.1} parent=11 // pred_region
          %s232 = ssub.s32 4096, 4096
          %233 = vsyncadd [#allocation6], %s232
          %s234 = sshll.u32 [#allocation7], 4
          %s235 = int_to_ptr.vmem [resolvable:$true] %s234
          %240 = dma.hbm_to_vmem [thread:$0]  %s3, 4096, %s235, [#allocation6], 128, 128, 8
        $region24: #{tpu_custom_call.1} parent=11 // pred_fallthru
          _
        // Predicated region
        $region25: #{tpu_custom_call.1} parent=11 // pred_check
          %p241 = pneg %p129
        $region26: #{tpu_custom_call.1} parent=11 // pred_check_branch
          %243 = sbr.rel (%p241) target = $region28
        $region27: #{tpu_custom_call.1} parent=11 // pred_region
          _
        $region28: #{tpu_custom_call.1} parent=11 // pred_fallthru
          _
        // Predicated region
        $region29: #{tpu_custom_call.1} parent=11 // pred_check
          %p244 = pneg %p150
        $region30: #{tpu_custom_call.1} parent=11 // pred_check_branch
          %246 = sbr.rel (%p244) target = $region32
        $region31: #{tpu_custom_call.1} parent=11 // pred_region
          _
        $region32: #{tpu_custom_call.1} parent=11 // pred_fallthru
          _
        // Predicated region
        $region33: #{tpu_custom_call.1} parent=11 // pred_check
          %p247 = pneg %p171
        $region34: #{tpu_custom_call.1} parent=11 // pred_check_branch
          %249 = sbr.rel (%p247) target = $region36
        $region35: #{tpu_custom_call.1} parent=11 // pred_region
          _
        $region36: #{tpu_custom_call.1} parent=11 // pred_fallthru
          _
      $region12: #{tpu_custom_call.1} parent=5 // pred_fallthru
        _
      %p250 = scmp.lt.s32.totalorder %s19, 2
      // Predicated region
      $region37: #{tpu_custom_call.1} parent=5 // pred_check
        %p251 = pneg %p250
      $region38: #{tpu_custom_call.1} parent=5 // pred_check_branch
        %253 = sbr.rel (%p251) target = $region40
      $region39: #{tpu_custom_call.1} parent=5 // pred_region
        // Predicated region
        $region41: #{tpu_custom_call.1} parent=39 // pred_check
          %p254 = pneg %p39
        $region42: #{tpu_custom_call.1} parent=39 // pred_check_branch
          %256 = sbr.rel (%p254) target = $region44
        $region43: #{tpu_custom_call.1} parent=39 // pred_region
          %s257 = sand.u32 %s29, 1
          %s258 = scalar_lea.sflag [#allocation4], %s257
          %s259 = sand.u32 %s29, 1
          %s260 = smul.addr %s259, 56
          %s261 = scalar_lea.vmem [#allocation3], %s260
          %s263 = ssub.s32 896, 896
          %264 = vsyncadd %s258, %s263
          %s265 = smul.addr %s19, 7
          %s266 = smul.addr %s265, 128
          %s267 = scalar_lea.hbm %s0, %s266
          %s269 = sshll.u32 %s261, 4
          %s270 = int_to_ptr.vmem [resolvable:$true] %s269
          %272 = dma.hbm_to_vmem [thread:$0]  %s267, 896, %s270, %s258
        $region44: #{tpu_custom_call.1} parent=39 // pred_fallthru
          _
      $region40: #{tpu_custom_call.1} parent=5 // pred_fallthru
        _
      %p273 = scmp.le.s32.totalorder 1, %s19
      %p274 = scmp.lt.s32.totalorder %s19, 3
      %p275 = pnand %p273, %p274
      %p276 = pneg %p275
      // Predicated region
      $region45: #{tpu_custom_call.1} parent=5 // pred_check
        _
      $region46: #{tpu_custom_call.1} parent=5 // pred_check_branch
        %278 = sbr.rel (%p275) target = $region48
      $region47: #{tpu_custom_call.1} parent=5 // pred_region
        %s279 = ssub.s32 %s19, 1
        %s280 = sand.u32 %s32, 1
        %s281 = scalar_lea.sflag [#allocation4], %s280
        %s282 = sand.u32 %s32, 1
        %s283 = smul.addr %s282, 56
        %s284 = scalar_lea.vmem [#allocation3], %s283
        // Predicated region
        $region49: #{tpu_custom_call.1} parent=47 // pred_check
          %p285 = pneg %p45
        $region50: #{tpu_custom_call.1} parent=47 // pred_check_branch
          %287 = sbr.rel (%p285) target = $region52
        $region51: #{tpu_custom_call.1} parent=47 // pred_region
          %288 = dma.done %s281, 896
        $region52: #{tpu_custom_call.1} parent=47 // pred_fallthru
          _
        // Predicated region
        $region53: #{tpu_custom_call.1} parent=47 // pred_check
          %p289 = pneg %p66
        $region54: #{tpu_custom_call.1} parent=47 // pred_check_branch
          %291 = sbr.rel (%p289) target = $region56
        $region55: #{tpu_custom_call.1} parent=47 // pred_region
          %292 = dma.done [#allocation6], 28672
        $region56: #{tpu_custom_call.1} parent=47 // pred_fallthru
          _
        // Predicated region
        $region57: #{tpu_custom_call.1} parent=47 // pred_check
          %p293 = pneg %p108
        $region58: #{tpu_custom_call.1} parent=47 // pred_check_branch
          %295 = sbr.rel (%p293) target = $region60
        $region59: #{tpu_custom_call.1} parent=47 // pred_region
          %296 = dma.done [#allocation6], 4096
        $region60: #{tpu_custom_call.1} parent=47 // pred_fallthru
          _
        %s297 = sand.u32 %s32, 1
        %s298 = scalar_lea.sflag [#allocation4], %s297
        %s299 = sand.u32 %s32, 1
        %s300 = smul.addr %s299, 56
        %s301 = scalar_lea.vmem [#allocation3], %s300
        %p302 = pneg %p45
        %p303 = pneg %p42
        %p304 = pneg %p66
        %p305 = pneg %p63
        %p306 = pneg %p87
        %p307 = pneg %p84
        %p308 = pneg %p108
        %p309 = pneg %p105
        %p310 = pneg %p129
        %p311 = pneg %p126
        %p312 = pneg %p150
        %p313 = pneg %p147
        %p314 = pneg %p171
        %p315 = pneg %p168
        %p316 = pneg %p197
        %p317 = pneg %p194
        %p318 = scmp.lt.s32.totalorder %s24, 1
        %s319 = scalar_select %p318, %s24, 1
        %s320 = smul.addr %s319, 8
        %s321 = scalar_lea.vmem %s7, %s320
        %p322 = scmp.lt.s32.totalorder %s24, 1
        %s323 = scalar_select %p322, %s24, 1
        %s324 = smul.addr %s323, 8
        %s325 = scalar_lea.vmem %s7, %s324
        %v326 = vld [vmem:[%s284] sm:$0xff]
        %v327 = vld [vmem:[%s284 + $0x8] sm:$0xff]
        %v328 = vld [vmem:[%s284 + $0x10] sm:$0xff]
        %v329 = vld [vmem:[%s284 + $0x18] sm:$0xff]
        %v330 = vld [vmem:[%s284 + $0x20] sm:$0xff]
        %v331 = vld [vmem:[%s284 + $0x28] sm:$0xff]
        %v332 = vld [vmem:[%s284 + $0x30] sm:$0xff]
        %v333 = vld [vmem:[#allocation5] sm:$0xff]
        %v334 = vld [vmem:[#allocation5 + $0x8] sm:$0xff]
        %v335 = vld [vmem:[#allocation5 + $0x10] sm:$0xff]
        %v336 = vld [vmem:[#allocation5 + $0x18] sm:$0xff]
        %v337 = vld [vmem:[#allocation5 + $0x20] sm:$0xff]
        %v338 = vld [vmem:[#allocation5 + $0x28] sm:$0xff]
        %v339 = vld [vmem:[#allocation5 + $0x30] sm:$0xff]
        %v340 = vld [vmem:[#allocation5 + $0x38] sm:$0xff]
        %v341 = vld [vmem:[#allocation5 + $0x40] sm:$0xff]
        %v342 = vld [vmem:[#allocation5 + $0x48] sm:$0xff]
        %v343 = vld [vmem:[#allocation5 + $0x50] sm:$0xff]
        %v344 = vld [vmem:[#allocation5 + $0x58] sm:$0xff]
        %v345 = vld [vmem:[#allocation5 + $0x60] sm:$0xff]
        %v346 = vld [vmem:[#allocation5 + $0x68] sm:$0xff]
        %v347 = vld [vmem:[#allocation5 + $0x70] sm:$0xff]
        %v348 = vld [vmem:[#allocation5 + $0x78] sm:$0xff]
        %v349 = vld [vmem:[#allocation5 + $0x80] sm:$0xff]
        %v350 = vld [vmem:[#allocation5 + $0x88] sm:$0xff]
        %v351 = vld [vmem:[#allocation5 + $0x90] sm:$0xff]
        %v352 = vld [vmem:[#allocation5 + $0x98] sm:$0xff]
        %v353 = vld [vmem:[#allocation5 + $0xa0] sm:$0xff]
        %v354 = vld [vmem:[#allocation5 + $0xa8] sm:$0xff]
        %v355 = vld [vmem:[#allocation5 + $0xb0] sm:$0xff]
        %v356 = vld [vmem:[#allocation5 + $0xb8] sm:$0xff]
        %v357 = vld [vmem:[#allocation5 + $0xc0] sm:$0xff]
        %v358 = vld [vmem:[#allocation5 + $0xc8] sm:$0xff]
        %v359 = vld [vmem:[#allocation5 + $0xd0] sm:$0xff]
        %v360 = vld [vmem:[#allocation5 + $0xd8] sm:$0xff]
        %v361 = vld [vmem:[#allocation5 + $0xe0] sm:$0xff]
        %v362 = vld [vmem:[#allocation5 + $0xe8] sm:$0xff]
        %v363 = vld [vmem:[#allocation5 + $0xf0] sm:$0xff]
        %v364 = vld [vmem:[#allocation5 + $0xf8] sm:$0xff]
        %v365 = vld [vmem:[#allocation5 + $0x100] sm:$0xff]
        %v366 = vld [vmem:[#allocation5 + $0x108] sm:$0xff]
        %v367 = vld [vmem:[#allocation5 + $0x110] sm:$0xff]
        %v368 = vld [vmem:[#allocation5 + $0x118] sm:$0xff]
        %v369 = vld [vmem:[#allocation5 + $0x120] sm:$0xff]
        %v370 = vld [vmem:[#allocation5 + $0x128] sm:$0xff]
        %v371 = vld [vmem:[#allocation5 + $0x130] sm:$0xff]
        %v372 = vld [vmem:[#allocation5 + $0x138] sm:$0xff]
        %v373 = vld [vmem:[#allocation5 + $0x140] sm:$0xff]
        %v374 = vld [vmem:[#allocation5 + $0x148] sm:$0xff]
        %v375 = vld [vmem:[#allocation5 + $0x150] sm:$0xff]
        %v376 = vld [vmem:[#allocation5 + $0x158] sm:$0xff]
        %v377 = vld [vmem:[#allocation5 + $0x160] sm:$0xff]
        %v378 = vld [vmem:[#allocation5 + $0x168] sm:$0xff]
        %v379 = vld [vmem:[#allocation5 + $0x170] sm:$0xff]
        %v380 = vld [vmem:[#allocation5 + $0x178] sm:$0xff]
        %v381 = vld [vmem:[#allocation5 + $0x180] sm:$0xff]
        %v382 = vld [vmem:[#allocation5 + $0x188] sm:$0xff]
        %v383 = vld [vmem:[#allocation5 + $0x190] sm:$0xff]
        %v384 = vld [vmem:[#allocation5 + $0x198] sm:$0xff]
        %v385 = vld [vmem:[#allocation5 + $0x1a0] sm:$0xff]
        %v386 = vld [vmem:[#allocation5 + $0x1a8] sm:$0xff]
        %v387 = vld [vmem:[#allocation5 + $0x1b0] sm:$0xff]
        %v388 = vld [vmem:[#allocation5 + $0x1b8] sm:$0xff]
        %v389 = vld [vmem:[#allocation5 + $0x1c0] sm:$0xff]
        %v390 = vld [vmem:[#allocation5 + $0x1c8] sm:$0xff]
        %v391 = vld [vmem:[#allocation5 + $0x1d0] sm:$0xff]
        %v392 = vld [vmem:[#allocation5 + $0x1d8] sm:$0xff]
        %v393 = vld [vmem:[#allocation5 + $0x1e0] sm:$0xff]
        %v394 = vld [vmem:[#allocation5 + $0x1e8] sm:$0xff]
        %v395 = vld [vmem:[#allocation5 + $0x1f0] sm:$0xff]
        %v396 = vld [vmem:[#allocation5 + $0x1f8] sm:$0xff]
        %v397 = vld [vmem:[#allocation5 + $0x200] sm:$0xff]
        %v398 = vld [vmem:[#allocation5 + $0x208] sm:$0xff]
        %v399 = vld [vmem:[#allocation5 + $0x210] sm:$0xff]
        %v400 = vld [vmem:[#allocation5 + $0x218] sm:$0xff]
        %v401 = vld [vmem:[#allocation5 + $0x220] sm:$0xff]
        %v402 = vld [vmem:[#allocation5 + $0x228] sm:$0xff]
        %v403 = vld [vmem:[#allocation5 + $0x230] sm:$0xff]
        %v404 = vld [vmem:[#allocation5 + $0x238] sm:$0xff]
        %v405 = vld [vmem:[#allocation5 + $0x240] sm:$0xff]
        %v406 = vld [vmem:[#allocation5 + $0x248] sm:$0xff]
        %v407 = vld [vmem:[#allocation5 + $0x250] sm:$0xff]
        %v408 = vld [vmem:[#allocation5 + $0x258] sm:$0xff]
        %v409 = vld [vmem:[#allocation5 + $0x260] sm:$0xff]
        %v410 = vld [vmem:[#allocation5 + $0x268] sm:$0xff]
        %v411 = vld [vmem:[#allocation5 + $0x270] sm:$0xff]
        %v412 = vld [vmem:[#allocation5 + $0x278] sm:$0xff]
        %v413 = vld [vmem:[#allocation5 + $0x280] sm:$0xff]
        %v414 = vld [vmem:[#allocation5 + $0x288] sm:$0xff]
        %v415 = vld [vmem:[#allocation5 + $0x290] sm:$0xff]
        %v416 = vld [vmem:[#allocation5 + $0x298] sm:$0xff]
        %v417 = vld [vmem:[#allocation5 + $0x2a0] sm:$0xff]
        %v418 = vld [vmem:[#allocation5 + $0x2a8] sm:$0xff]
        %v419 = vld [vmem:[#allocation5 + $0x2b0] sm:$0xff]
        %v420 = vld [vmem:[#allocation5 + $0x2b8] sm:$0xff]
        %v421 = vld [vmem:[#allocation5 + $0x2c0] sm:$0xff]
        %v422 = vld [vmem:[#allocation5 + $0x2c8] sm:$0xff]
        %v423 = vld [vmem:[#allocation5 + $0x2d0] sm:$0xff]
        %v424 = vld [vmem:[#allocation5 + $0x2d8] sm:$0xff]
        %v425 = vld [vmem:[#allocation5 + $0x2e0] sm:$0xff]
        %v426 = vld [vmem:[#allocation5 + $0x2e8] sm:$0xff]
        %v427 = vld [vmem:[#allocation5 + $0x2f0] sm:$0xff]
        %v428 = vld [vmem:[#allocation5 + $0x2f8] sm:$0xff]
        %v429 = vld [vmem:[#allocation5 + $0x300] sm:$0xff]
        %v430 = vld [vmem:[#allocation5 + $0x308] sm:$0xff]
        %v431 = vld [vmem:[#allocation5 + $0x310] sm:$0xff]
        %v432 = vld [vmem:[#allocation5 + $0x318] sm:$0xff]
        %v433 = vld [vmem:[#allocation5 + $0x320] sm:$0xff]
        %v434 = vld [vmem:[#allocation5 + $0x328] sm:$0xff]
        %v435 = vld [vmem:[#allocation5 + $0x330] sm:$0xff]
        %v436 = vld [vmem:[#allocation5 + $0x338] sm:$0xff]
        %v437 = vld [vmem:[#allocation5 + $0x340] sm:$0xff]
        %v438 = vld [vmem:[#allocation5 + $0x348] sm:$0xff]
        %v439 = vld [vmem:[#allocation5 + $0x350] sm:$0xff]
        %v440 = vld [vmem:[#allocation5 + $0x358] sm:$0xff]
        %v441 = vld [vmem:[#allocation5 + $0x360] sm:$0xff]
        %v442 = vld [vmem:[#allocation5 + $0x368] sm:$0xff]
        %v443 = vld [vmem:[#allocation5 + $0x370] sm:$0xff]
        %v444 = vld [vmem:[#allocation5 + $0x378] sm:$0xff]
        %v445 = vld [vmem:[#allocation5 + $0x380] sm:$0xff]
        %v446 = vld [vmem:[#allocation5 + $0x388] sm:$0xff]
        %v447 = vld [vmem:[#allocation5 + $0x390] sm:$0xff]
        %v448 = vld [vmem:[#allocation5 + $0x398] sm:$0xff]
        %v449 = vld [vmem:[#allocation5 + $0x3a0] sm:$0xff]
        %v450 = vld [vmem:[#allocation5 + $0x3a8] sm:$0xff]
        %v451 = vld [vmem:[#allocation5 + $0x3b0] sm:$0xff]
        %v452 = vld [vmem:[#allocation5 + $0x3b8] sm:$0xff]
        %v453 = vld [vmem:[#allocation5 + $0x3c0] sm:$0xff]
        %v454 = vld [vmem:[#allocation5 + $0x3c8] sm:$0xff]
        %v455 = vld [vmem:[#allocation5 + $0x3d0] sm:$0xff]
        %v456 = vld [vmem:[#allocation5 + $0x3d8] sm:$0xff]
        %v457 = vld [vmem:[#allocation5 + $0x3e0] sm:$0xff]
        %v458 = vld [vmem:[#allocation5 + $0x3e8] sm:$0xff]
        %v459 = vld [vmem:[#allocation5 + $0x3f0] sm:$0xff]
        %v460 = vld [vmem:[#allocation5 + $0x3f8] sm:$0xff]
        %v461 = vld [vmem:[#allocation5 + $0x400] sm:$0xff]
        %v462 = vld [vmem:[#allocation5 + $0x408] sm:$0xff]
        %v463 = vld [vmem:[#allocation5 + $0x410] sm:$0xff]
        %v464 = vld [vmem:[#allocation5 + $0x418] sm:$0xff]
        %v465 = vld [vmem:[#allocation5 + $0x420] sm:$0xff]
        %v466 = vld [vmem:[#allocation5 + $0x428] sm:$0xff]
        %v467 = vld [vmem:[#allocation5 + $0x430] sm:$0xff]
        %v468 = vld [vmem:[#allocation5 + $0x438] sm:$0xff]
        %v469 = vld [vmem:[#allocation5 + $0x440] sm:$0xff]
        %v470 = vld [vmem:[#allocation5 + $0x448] sm:$0xff]
        %v471 = vld [vmem:[#allocation5 + $0x450] sm:$0xff]
        %v472 = vld [vmem:[#allocation5 + $0x458] sm:$0xff]
        %v473 = vld [vmem:[#allocation5 + $0x460] sm:$0xff]
        %v474 = vld [vmem:[#allocation5 + $0x468] sm:$0xff]
        %v475 = vld [vmem:[#allocation5 + $0x470] sm:$0xff]
        %v476 = vld [vmem:[#allocation5 + $0x478] sm:$0xff]
        %v477 = vld [vmem:[#allocation5 + $0x480] sm:$0xff]
        %v478 = vld [vmem:[#allocation5 + $0x488] sm:$0xff]
        %v479 = vld [vmem:[#allocation5 + $0x490] sm:$0xff]
        %v480 = vld [vmem:[#allocation5 + $0x498] sm:$0xff]
        %v481 = vld [vmem:[#allocation5 + $0x4a0] sm:$0xff]
        %v482 = vld [vmem:[#allocation5 + $0x4a8] sm:$0xff]
        %v483 = vld [vmem:[#allocation5 + $0x4b0] sm:$0xff]
        %v484 = vld [vmem:[#allocation5 + $0x4b8] sm:$0xff]
        %v485 = vld [vmem:[#allocation5 + $0x4c0] sm:$0xff]
        %v486 = vld [vmem:[#allocation5 + $0x4c8] sm:$0xff]
        %v487 = vld [vmem:[#allocation5 + $0x4d0] sm:$0xff]
        %v488 = vld [vmem:[#allocation5 + $0x4d8] sm:$0xff]
        %v489 = vld [vmem:[#allocation5 + $0x4e0] sm:$0xff]
        %v490 = vld [vmem:[#allocation5 + $0x4e8] sm:$0xff]
        %v491 = vld [vmem:[#allocation5 + $0x4f0] sm:$0xff]
        %v492 = vld [vmem:[#allocation5 + $0x4f8] sm:$0xff]
        %v493 = vld [vmem:[#allocation5 + $0x500] sm:$0xff]
        %v494 = vld [vmem:[#allocation5 + $0x508] sm:$0xff]
        %v495 = vld [vmem:[#allocation5 + $0x510] sm:$0xff]
        %v496 = vld [vmem:[#allocation5 + $0x518] sm:$0xff]
        %v497 = vld [vmem:[#allocation5 + $0x520] sm:$0xff]
        %v498 = vld [vmem:[#allocation5 + $0x528] sm:$0xff]
        %v499 = vld [vmem:[#allocation5 + $0x530] sm:$0xff]
        %v500 = vld [vmem:[#allocation5 + $0x538] sm:$0xff]
        %v501 = vld [vmem:[#allocation5 + $0x540] sm:$0xff]
        %v502 = vld [vmem:[#allocation5 + $0x548] sm:$0xff]
        %v503 = vld [vmem:[#allocation5 + $0x550] sm:$0xff]
        %v504 = vld [vmem:[#allocation5 + $0x558] sm:$0xff]
        %v505 = vld [vmem:[#allocation5 + $0x560] sm:$0xff]
        %v506 = vld [vmem:[#allocation5 + $0x568] sm:$0xff]
        %v507 = vld [vmem:[#allocation5 + $0x570] sm:$0xff]
        %v508 = vld [vmem:[#allocation5 + $0x578] sm:$0xff]
        %v509 = vld [vmem:[#allocation5 + $0x580] sm:$0xff]
        %v510 = vld [vmem:[#allocation5 + $0x588] sm:$0xff]
        %v511 = vld [vmem:[#allocation5 + $0x590] sm:$0xff]
        %v512 = vld [vmem:[#allocation5 + $0x598] sm:$0xff]
        %v513 = vld [vmem:[#allocation5 + $0x5a0] sm:$0xff]
        %v514 = vld [vmem:[#allocation5 + $0x5a8] sm:$0xff]
        %v515 = vld [vmem:[#allocation5 + $0x5b0] sm:$0xff]
        %v516 = vld [vmem:[#allocation5 + $0x5b8] sm:$0xff]
        %v517 = vld [vmem:[#allocation5 + $0x5c0] sm:$0xff]
        %v518 = vld [vmem:[#allocation5 + $0x5c8] sm:$0xff]
        %v519 = vld [vmem:[#allocation5 + $0x5d0] sm:$0xff]
        %v520 = vld [vmem:[#allocation5 + $0x5d8] sm:$0xff]
        %v521 = vld [vmem:[#allocation5 + $0x5e0] sm:$0xff]
        %v522 = vld [vmem:[#allocation5 + $0x5e8] sm:$0xff]
        %v523 = vld [vmem:[#allocation5 + $0x5f0] sm:$0xff]
        %v524 = vld [vmem:[#allocation5 + $0x5f8] sm:$0xff]
        %v525 = vld [vmem:[#allocation5 + $0x600] sm:$0xff]
        %v526 = vld [vmem:[#allocation5 + $0x608] sm:$0xff]
        %v527 = vld [vmem:[#allocation5 + $0x610] sm:$0xff]
        %v528 = vld [vmem:[#allocation5 + $0x618] sm:$0xff]
        %v529 = vld [vmem:[#allocation5 + $0x620] sm:$0xff]
        %v530 = vld [vmem:[#allocation5 + $0x628] sm:$0xff]
        %v531 = vld [vmem:[#allocation5 + $0x630] sm:$0xff]
        %v532 = vld [vmem:[#allocation5 + $0x638] sm:$0xff]
        %v533 = vld [vmem:[#allocation5 + $0x640] sm:$0xff]
        %v534 = vld [vmem:[#allocation5 + $0x648] sm:$0xff]
        %v535 = vld [vmem:[#allocation5 + $0x650] sm:$0xff]
        %v536 = vld [vmem:[#allocation5 + $0x658] sm:$0xff]
        %v537 = vld [vmem:[#allocation5 + $0x660] sm:$0xff]
        %v538 = vld [vmem:[#allocation5 + $0x668] sm:$0xff]
        %v539 = vld [vmem:[#allocation5 + $0x670] sm:$0xff]
        %v540 = vld [vmem:[#allocation5 + $0x678] sm:$0xff]
        %v541 = vld [vmem:[#allocation5 + $0x680] sm:$0xff]
        %v542 = vld [vmem:[#allocation5 + $0x688] sm:$0xff]
        %v543 = vld [vmem:[#allocation5 + $0x690] sm:$0xff]
        %v544 = vld [vmem:[#allocation5 + $0x698] sm:$0xff]
        %v545 = vld [vmem:[#allocation5 + $0x6a0] sm:$0xff]
        %v546 = vld [vmem:[#allocation5 + $0x6a8] sm:$0xff]
        %v547 = vld [vmem:[#allocation5 + $0x6b0] sm:$0xff]
        %v548 = vld [vmem:[#allocation5 + $0x6b8] sm:$0xff]
        %v549 = vld [vmem:[#allocation5 + $0x6c0] sm:$0xff]
        %v550 = vld [vmem:[#allocation5 + $0x6c8] sm:$0xff]
        %v551 = vld [vmem:[#allocation5 + $0x6d0] sm:$0xff]
        %v552 = vld [vmem:[#allocation5 + $0x6d8] sm:$0xff]
        %v553 = vld [vmem:[#allocation5 + $0x6e0] sm:$0xff]
        %v554 = vld [vmem:[#allocation5 + $0x6e8] sm:$0xff]
        %v555 = vld [vmem:[#allocation5 + $0x6f0] sm:$0xff]
        %v556 = vld [vmem:[#allocation5 + $0x6f8] sm:$0xff]
        %v557 = vld [vmem:[%s2] sm:$0x3]
        %v559 = vlaneseq
        %v560 = vshrl.u32 %v559, 7
        %v561 = vsub.s32 0, %v560
        %v562 = vrot.slane %v557, %v561
        %v563 = vlaneseq
        %v564 = vshrl.u32 %v563, 7
        %v565 = vsub.s32 1, %v564
        %v566 = vrot.slane %v557, %v565
        %569 = vmatprep.subr.mxu0 %v334
        %570 = vmatpush1.msra.mxu0 %v333
        %571 = vmatprep.subr.mxu0 %v336
        %572 = vmatpush1.msra.mxu0 %v335
        %573 = vmatprep.subr.mxu0 %v338
        %574 = vmatpush1.msra.mxu0 %v337
        %575 = vmatprep.subr.mxu0 %v340
        %576 = vmatpush1.msra.mxu0 %v339
        %577 = vmatprep.subr.mxu0 %v342
        %578 = vmatpush1.msra.mxu0 %v341
        %579 = vmatprep.subr.mxu0 %v344
        %580 = vmatpush1.msra.mxu0 %v343
        %581 = vmatprep.subr.mxu0 %v346
        %582 = vmatpush1.msra.mxu0 %v345
        %583 = vmatprep.subr.mxu0 %v348
        %584 = vmatpush1.msra.mxu0 %v347
        %585 = vmatprep.subr.mxu0 %v350
        %586 = vmatpush1.msra.mxu0 %v349
        %587 = vmatprep.subr.mxu0 %v352
        %588 = vmatpush1.msra.mxu0 %v351
        %589 = vmatprep.subr.mxu0 %v354
        %590 = vmatpush1.msra.mxu0 %v353
        %591 = vmatprep.subr.mxu0 %v356
        %592 = vmatpush1.msra.mxu0 %v355
        %593 = vmatprep.subr.mxu0 %v358
        %594 = vmatpush1.msra.mxu0 %v357
        %595 = vmatprep.subr.mxu0 %v360
        %596 = vmatpush1.msra.mxu0 %v359
        %597 = vmatprep.subr.mxu0 %v362
        %598 = vmatpush1.msra.mxu0 %v361
        %599 = vmatprep.subr.mxu0 %v364
        %600 = vmatpush1.msra.mxu0 %v363
        %601 = vmatprep.subr.mxu0 %v366
        %602 = vmatpush1.msra.mxu0 %v365
        %603 = vmatprep.subr.mxu0 %v368
        %604 = vmatpush1.msra.mxu0 %v367
        %605 = vmatprep.subr.mxu0 %v370
        %606 = vmatpush1.msra.mxu0 %v369
        %607 = vmatprep.subr.mxu0 %v372
        %608 = vmatpush1.msra.mxu0 %v371
        %609 = vmatprep.subr.mxu0 %v374
        %610 = vmatpush1.msra.mxu0 %v373
        %611 = vmatprep.subr.mxu0 %v376
        %612 = vmatpush1.msra.mxu0 %v375
        %613 = vmatprep.subr.mxu0 %v378
        %614 = vmatpush1.msra.mxu0 %v377
        %615 = vmatprep.subr.mxu0 %v380
        %616 = vmatpush1.msra.mxu0 %v379
        %617 = vmatprep.subr.mxu0 %v382
        %618 = vmatpush1.msra.mxu0 %v381
        %619 = vmatprep.subr.mxu0 %v384
        %620 = vmatpush1.msra.mxu0 %v383
        %621 = vmatprep.subr.mxu0 %v386
        %622 = vmatpush1.msra.mxu0 %v385
        %623 = vmatprep.subr.mxu0 %v388
        %624 = vmatpush1.msra.mxu0 %v387
        %625 = vmatprep.subr.mxu0 %v390
        %626 = vmatpush1.msra.mxu0 %v389
        %627 = vmatprep.subr.mxu0 %v392
        %628 = vmatpush1.msra.mxu0 %v391
        %629 = vmatprep.subr.mxu0 %v394
        %630 = vmatpush1.msra.mxu0 %v393
        %631 = vmatprep.subr.mxu0 %v396
        %632 = vmatpush1.msra.mxu0 %v395
        %633 = vmatprep.mubr.f32.mxu0 %v327
        %634 = vmatmul.mubr.f32.gmra.mrb[0].mxu0 %v326
        %v635 = vpop.f32.mrb[0].mxu0
        %v636 = vadd.f32 %v562, %v635
        %v637 = vpop.f32.mrb[0].mxu0
        %v638 = vadd.f32 %v566, %v637
        %639 = vdwg.mxu0
        %640 = vmatprep.subr.mxu0 %v398
        %641 = vmatpush1.msra.mxu0 %v397
        %642 = vmatprep.subr.mxu0 %v400
        %643 = vmatpush1.msra.mxu0 %v399
        %644 = vmatprep.subr.mxu0 %v402
        %645 = vmatpush1.msra.mxu0 %v401
        %646 = vmatprep.subr.mxu0 %v404
        %647 = vmatpush1.msra.mxu0 %v403
        %648 = vmatprep.subr.mxu0 %v406
        %649 = vmatpush1.msra.mxu0 %v405
        %650 = vmatprep.subr.mxu0 %v408
        %651 = vmatpush1.msra.mxu0 %v407
        %652 = vmatprep.subr.mxu0 %v410
        %653 = vmatpush1.msra.mxu0 %v409
        %654 = vmatprep.subr.mxu0 %v412
        %655 = vmatpush1.msra.mxu0 %v411
        %656 = vmatprep.subr.mxu0 %v414
        %657 = vmatpush1.msra.mxu0 %v413
        %658 = vmatprep.subr.mxu0 %v416
        %659 = vmatpush1.msra.mxu0 %v415
        %660 = vmatprep.subr.mxu0 %v418
        %661 = vmatpush1.msra.mxu0 %v417
        %662 = vmatprep.subr.mxu0 %v420
        %663 = vmatpush1.msra.mxu0 %v419
        %664 = vmatprep.subr.mxu0 %v422
        %665 = vmatpush1.msra.mxu0 %v421
        %666 = vmatprep.subr.mxu0 %v424
        %667 = vmatpush1.msra.mxu0 %v423
        %668 = vmatprep.subr.mxu0 %v426
        %669 = vmatpush1.msra.mxu0 %v425
        %670 = vmatprep.subr.mxu0 %v428
        %671 = vmatpush1.msra.mxu0 %v427
        %672 = vmatprep.subr.mxu0 %v430
        %673 = vmatpush1.msra.mxu0 %v429
        %674 = vmatprep.subr.mxu0 %v432
        %675 = vmatpush1.msra.mxu0 %v431
        %676 = vmatprep.subr.mxu0 %v434
        %677 = vmatpush1.msra.mxu0 %v433
        %678 = vmatprep.subr.mxu0 %v436
        %679 = vmatpush1.msra.mxu0 %v435
        %680 = vmatprep.subr.mxu0 %v438
        %681 = vmatpush1.msra.mxu0 %v437
        %682 = vmatprep.subr.mxu0 %v440
        %683 = vmatpush1.msra.mxu0 %v439
        %684 = vmatprep.subr.mxu0 %v442
        %685 = vmatpush1.msra.mxu0 %v441
        %686 = vmatprep.subr.mxu0 %v444
        %687 = vmatpush1.msra.mxu0 %v443
        %688 = vmatprep.subr.mxu0 %v446
        %689 = vmatpush1.msra.mxu0 %v445
        %690 = vmatprep.subr.mxu0 %v448
        %691 = vmatpush1.msra.mxu0 %v447
        %692 = vmatprep.subr.mxu0 %v450
        %693 = vmatpush1.msra.mxu0 %v449
        %694 = vmatprep.subr.mxu0 %v452
        %695 = vmatpush1.msra.mxu0 %v451
        %696 = vmatprep.subr.mxu0 %v454
        %697 = vmatpush1.msra.mxu0 %v453
        %698 = vmatprep.subr.mxu0 %v456
        %699 = vmatpush1.msra.mxu0 %v455
        %700 = vmatprep.subr.mxu0 %v458
        %701 = vmatpush1.msra.mxu0 %v457
        %702 = vmatprep.subr.mxu0 %v460
        %703 = vmatpush1.msra.mxu0 %v459
        %704 = vmatprep.mubr.f32.mxu0 %v329
        %705 = vmatmul.mubr.f32.gmra.mrb[0].mxu0 %v328
        %v706 = vpop.f32.mrb[0].mxu0
        %v707 = vadd.f32 %v636, %v706
        %v708 = vpop.f32.mrb[0].mxu0
        %v709 = vadd.f32 %v638, %v708
        %710 = vdwg.mxu0
        %711 = vmatprep.subr.mxu0 %v462
        %712 = vmatpush1.msra.mxu0 %v461
        %713 = vmatprep.subr.mxu0 %v464
        %714 = vmatpush1.msra.mxu0 %v463
        %715 = vmatprep.subr.mxu0 %v466
        %716 = vmatpush1.msra.mxu0 %v465
        %717 = vmatprep.subr.mxu0 %v468
        %718 = vmatpush1.msra.mxu0 %v467
        %719 = vmatprep.subr.mxu0 %v470
        %720 = vmatpush1.msra.mxu0 %v469
        %721 = vmatprep.subr.mxu0 %v472
        %722 = vmatpush1.msra.mxu0 %v471
        %723 = vmatprep.subr.mxu0 %v474
        %724 = vmatpush1.msra.mxu0 %v473
        %725 = vmatprep.subr.mxu0 %v476
        %726 = vmatpush1.msra.mxu0 %v475
        %727 = vmatprep.subr.mxu0 %v478
        %728 = vmatpush1.msra.mxu0 %v477
        %729 = vmatprep.subr.mxu0 %v480
        %730 = vmatpush1.msra.mxu0 %v479
        %731 = vmatprep.subr.mxu0 %v482
        %732 = vmatpush1.msra.mxu0 %v481
        %733 = vmatprep.subr.mxu0 %v484
        %734 = vmatpush1.msra.mxu0 %v483
        %735 = vmatprep.subr.mxu0 %v486
        %736 = vmatpush1.msra.mxu0 %v485
        %737 = vmatprep.subr.mxu0 %v488
        %738 = vmatpush1.msra.mxu0 %v487
        %739 = vmatprep.subr.mxu0 %v490
        %740 = vmatpush1.msra.mxu0 %v489
        %741 = vmatprep.subr.mxu0 %v492
        %742 = vmatpush1.msra.mxu0 %v491
        %743 = vmatprep.subr.mxu0 %v494
        %744 = vmatpush1.msra.mxu0 %v493
        %745 = vmatprep.subr.mxu0 %v496
        %746 = vmatpush1.msra.mxu0 %v495
        %747 = vmatprep.subr.mxu0 %v498
        %748 = vmatpush1.msra.mxu0 %v497
        %749 = vmatprep.subr.mxu0 %v500
        %750 = vmatpush1.msra.mxu0 %v499
        %751 = vmatprep.subr.mxu0 %v502
        %752 = vmatpush1.msra.mxu0 %v501
        %753 = vmatprep.subr.mxu0 %v504
        %754 = vmatpush1.msra.mxu0 %v503
        %755 = vmatprep.subr.mxu0 %v506
        %756 = vmatpush1.msra.mxu0 %v505
        %757 = vmatprep.subr.mxu0 %v508
        %758 = vmatpush1.msra.mxu0 %v507
        %759 = vmatprep.subr.mxu0 %v510
        %760 = vmatpush1.msra.mxu0 %v509
        %761 = vmatprep.subr.mxu0 %v512
        %762 = vmatpush1.msra.mxu0 %v511
        %763 = vmatprep.subr.mxu0 %v514
        %764 = vmatpush1.msra.mxu0 %v513
        %765 = vmatprep.subr.mxu0 %v516
        %766 = vmatpush1.msra.mxu0 %v515
        %767 = vmatprep.subr.mxu0 %v518
        %768 = vmatpush1.msra.mxu0 %v517
        %769 = vmatprep.subr.mxu0 %v520
        %770 = vmatpush1.msra.mxu0 %v519
        %771 = vmatprep.subr.mxu0 %v522
        %772 = vmatpush1.msra.mxu0 %v521
        %773 = vmatprep.subr.mxu0 %v524
        %774 = vmatpush1.msra.mxu0 %v523
        %775 = vmatprep.mubr.f32.mxu0 %v331
        %776 = vmatmul.mubr.f32.gmra.mrb[0].mxu0 %v330
        %v777 = vpop.f32.mrb[0].mxu0
        %v778 = vadd.f32 %v707, %v777
        %v779 = vpop.f32.mrb[0].mxu0
        %v780 = vadd.f32 %v709, %v779
        %781 = vdwg.mxu0
        %782 = vmatprep.subr.mxu0 %v526
        %783 = vmatpush1.msra.mxu0 %v525
        %784 = vmatprep.subr.mxu0 %v528
        %785 = vmatpush1.msra.mxu0 %v527
        %786 = vmatprep.subr.mxu0 %v530
        %787 = vmatpush1.msra.mxu0 %v529
        %788 = vmatprep.subr.mxu0 %v532
        %789 = vmatpush1.msra.mxu0 %v531
        %790 = vmatprep.subr.mxu0 %v534
        %791 = vmatpush1.msra.mxu0 %v533
        %792 = vmatprep.subr.mxu0 %v536
        %793 = vmatpush1.msra.mxu0 %v535
        %794 = vmatprep.subr.mxu0 %v538
        %795 = vmatpush1.msra.mxu0 %v537
        %796 = vmatprep.subr.mxu0 %v540
        %797 = vmatpush1.msra.mxu0 %v539
        %798 = vmatprep.subr.mxu0 %v542
        %799 = vmatpush1.msra.mxu0 %v541
        %800 = vmatprep.subr.mxu0 %v544
        %801 = vmatpush1.msra.mxu0 %v543
        %802 = vmatprep.subr.mxu0 %v546
        %803 = vmatpush1.msra.mxu0 %v545
        %804 = vmatprep.subr.mxu0 %v548
        %805 = vmatpush1.msra.mxu0 %v547
        %806 = vmatprep.subr.mxu0 %v550
        %807 = vmatpush1.msra.mxu0 %v549
        %808 = vmatprep.subr.mxu0 %v552
        %809 = vmatpush1.msra.mxu0 %v551
        %810 = vmatprep.subr.mxu0 %v554
        %811 = vmatpush1.msra.mxu0 %v553
        %812 = vmatprep.subr.mxu0 %v556
        %813 = vmatpush1.msra.mxu0 %v555
        %814 = vmatprep.subr.mxu0 0.0
        %815 = vmatpush1.msra.mxu0 0.0
        %816 = vmatprep.subr.mxu0 0.0
        %817 = vmatpush1.msra.mxu0 0.0
        %818 = vmatprep.subr.mxu0 0.0
        %819 = vmatpush1.msra.mxu0 0.0
        %820 = vmatprep.subr.mxu0 0.0
        %821 = vmatpush1.msra.mxu0 0.0
        %822 = vmatprep.subr.mxu0 0.0
        %823 = vmatpush1.msra.mxu0 0.0
        %824 = vmatprep.subr.mxu0 0.0
        %825 = vmatpush1.msra.mxu0 0.0
        %826 = vmatprep.subr.mxu0 0.0
        %827 = vmatpush1.msra.mxu0 0.0
        %828 = vmatprep.subr.mxu0 0.0
        %829 = vmatpush1.msra.mxu0 0.0
        %830 = vmatprep.subr.mxu0 0.0
        %831 = vmatpush1.msra.mxu0 0.0
        %832 = vmatprep.subr.mxu0 0.0
        %833 = vmatpush1.msra.mxu0 0.0
        %834 = vmatprep.subr.mxu0 0.0
        %835 = vmatpush1.msra.mxu0 0.0
        %836 = vmatprep.subr.mxu0 0.0
        %837 = vmatpush1.msra.mxu0 0.0
        %838 = vmatprep.subr.mxu0 0.0
        %839 = vmatpush1.msra.mxu0 0.0
        %840 = vmatprep.subr.mxu0 0.0
        %841 = vmatpush1.msra.mxu0 0.0
        %842 = vmatprep.subr.mxu0 0.0
        %843 = vmatpush1.msra.mxu0 0.0
        %844 = vmatprep.subr.mxu0 0.0
        %845 = vmatpush1.msra.mxu0 0.0
        %846 = vmatprep.mubr.f32.mxu0 0.0
        %847 = vmatmul.mubr.f32.gmra.mrb[0].mxu0 %v332
        %v848 = vpop.f32.mrb[0].mxu0
        %v849 = vadd.f32 %v778, %v848
        %v850 = vpop.f32.mrb[0].mxu0
        %v851 = vadd.f32 %v780, %v850
        %852 = vdwg.mxu0
        %vm853 = vcmp.gt.f32.partialorder %v849, 0.0
        %vm854 = vcmp.gt.f32.partialorder %v851, 0.0
        %v855 = vmul.f32 %v849, 0.01
        %v856 = vmul.f32 %v851, 0.01
        %v857 = vsel %vm853, %v849, %v855
        %v858 = vsel %vm854, %v851, %v856
        %v859 = vld [vmem:[#allocation7] sm:$0xff]
        %v860 = vld [vmem:[#allocation7 + $0x8] sm:$0xff]
        %v861 = vld [vmem:[#allocation7 + $0x10] sm:$0xff]
        %v862 = vld [vmem:[#allocation7 + $0x18] sm:$0xff]
        %v863 = vld [vmem:[#allocation7 + $0x20] sm:$0xff]
        %v864 = vld [vmem:[#allocation7 + $0x28] sm:$0xff]
        %v865 = vld [vmem:[#allocation7 + $0x30] sm:$0xff]
        %v866 = vld [vmem:[#allocation7 + $0x38] sm:$0xff]
        %v867 = vld [vmem:[#allocation7 + $0x40] sm:$0xff]
        %v868 = vld [vmem:[#allocation7 + $0x48] sm:$0xff]
        %v869 = vld [vmem:[#allocation7 + $0x50] sm:$0xff]
        %v870 = vld [vmem:[#allocation7 + $0x58] sm:$0xff]
        %v871 = vld [vmem:[#allocation7 + $0x60] sm:$0xff]
        %v872 = vld [vmem:[#allocation7 + $0x68] sm:$0xff]
        %v873 = vld [vmem:[#allocation7 + $0x70] sm:$0xff]
        %v874 = vld [vmem:[#allocation7 + $0x78] sm:$0xff]
        %v875 = vld [vmem:[#allocation7 + $0x80] sm:$0xff]
        %v876 = vld [vmem:[#allocation7 + $0x88] sm:$0xff]
        %v877 = vld [vmem:[#allocation7 + $0x90] sm:$0xff]
        %v878 = vld [vmem:[#allocation7 + $0x98] sm:$0xff]
        %v879 = vld [vmem:[#allocation7 + $0xa0] sm:$0xff]
        %v880 = vld [vmem:[#allocation7 + $0xa8] sm:$0xff]
        %v881 = vld [vmem:[#allocation7 + $0xb0] sm:$0xff]
        %v882 = vld [vmem:[#allocation7 + $0xb8] sm:$0xff]
        %v883 = vld [vmem:[#allocation7 + $0xc0] sm:$0xff]
        %v884 = vld [vmem:[#allocation7 + $0xc8] sm:$0xff]
        %v885 = vld [vmem:[#allocation7 + $0xd0] sm:$0xff]
        %v886 = vld [vmem:[#allocation7 + $0xd8] sm:$0xff]
        %v887 = vld [vmem:[#allocation7 + $0xe0] sm:$0xff]
        %v888 = vld [vmem:[#allocation7 + $0xe8] sm:$0xff]
        %v889 = vld [vmem:[#allocation7 + $0xf0] sm:$0xff]
        %v890 = vld [vmem:[#allocation7 + $0xf8] sm:$0xff]
        %v891 = vld [vmem:[%s4] sm:$0x1]
        %v893 = vlaneseq
        %v894 = vshrl.u32 %v893, 7
        %v895 = vsub.s32 0, %v894
        %v896 = vrot.slane %v891, %v895
        %898 = vmatprep.subr.mxu0 0.0
        %899 = vmatpush1.msra.mxu0 %v859
        %900 = vmatprep.subr.mxu0 0.0
        %901 = vmatpush1.msra.mxu0 %v860
        %902 = vmatprep.subr.mxu0 0.0
        %903 = vmatpush1.msra.mxu0 %v861
        %904 = vmatprep.subr.mxu0 0.0
        %905 = vmatpush1.msra.mxu0 %v862
        %906 = vmatprep.subr.mxu0 0.0
        %907 = vmatpush1.msra.mxu0 %v863
        %908 = vmatprep.subr.mxu0 0.0
        %909 = vmatpush1.msra.mxu0 %v864
        %910 = vmatprep.subr.mxu0 0.0
        %911 = vmatpush1.msra.mxu0 %v865
        %912 = vmatprep.subr.mxu0 0.0
        %913 = vmatpush1.msra.mxu0 %v866
        %914 = vmatprep.subr.mxu0 0.0
        %915 = vmatpush1.msra.mxu0 %v867
        %916 = vmatprep.subr.mxu0 0.0
        %917 = vmatpush1.msra.mxu0 %v868
        %918 = vmatprep.subr.mxu0 0.0
        %919 = vmatpush1.msra.mxu0 %v869
        %920 = vmatprep.subr.mxu0 0.0
        %921 = vmatpush1.msra.mxu0 %v870
        %922 = vmatprep.subr.mxu0 0.0
        %923 = vmatpush1.msra.mxu0 %v871
        %924 = vmatprep.subr.mxu0 0.0
        %925 = vmatpush1.msra.mxu0 %v872
        %926 = vmatprep.subr.mxu0 0.0
        %927 = vmatpush1.msra.mxu0 %v873
        %928 = vmatprep.subr.mxu0 0.0
        %929 = vmatpush1.msra.mxu0 %v874
        %930 = vmatprep.subr.mxu0 0.0
        %931 = vmatpush1.msra.mxu0 %v875
        %932 = vmatprep.subr.mxu0 0.0
        %933 = vmatpush1.msra.mxu0 %v876
        %934 = vmatprep.subr.mxu0 0.0
        %935 = vmatpush1.msra.mxu0 %v877
        %936 = vmatprep.subr.mxu0 0.0
        %937 = vmatpush1.msra.mxu0 %v878
        %938 = vmatprep.subr.mxu0 0.0
        %939 = vmatpush1.msra.mxu0 %v879
        %940 = vmatprep.subr.mxu0 0.0
        %941 = vmatpush1.msra.mxu0 %v880
        %942 = vmatprep.subr.mxu0 0.0
        %943 = vmatpush1.msra.mxu0 %v881
        %944 = vmatprep.subr.mxu0 0.0
        %945 = vmatpush1.msra.mxu0 %v882
        %946 = vmatprep.subr.mxu0 0.0
        %947 = vmatpush1.msra.mxu0 %v883
        %948 = vmatprep.subr.mxu0 0.0
        %949 = vmatpush1.msra.mxu0 %v884
        %950 = vmatprep.subr.mxu0 0.0
        %951 = vmatpush1.msra.mxu0 %v885
        %952 = vmatprep.subr.mxu0 0.0
        %953 = vmatpush1.msra.mxu0 %v886
        %954 = vmatprep.subr.mxu0 0.0
        %955 = vmatpush1.msra.mxu0 %v887
        %956 = vmatprep.subr.mxu0 0.0
        %957 = vmatpush1.msra.mxu0 %v888
        %958 = vmatprep.subr.mxu0 0.0
        %959 = vmatpush1.msra.mxu0 %v889
        %960 = vmatprep.subr.mxu0 0.0
        %961 = vmatpush1.msra.mxu0 %v890
        %962 = vmatprep.mubr.f32.mxu0 %v858
        %963 = vmatmul.mubr.f32.gmra.mrb[0].mxu0 %v857
        %v964 = vpop.f32.mrb[0].mxu0
        %v965 = vadd.f32 %v896, %v964
        %v966 = vpop.f32.mrb[0].mxu0
        %967 = vdwg.mxu0
        %vm968 = vcmp.gt.f32.partialorder %v965, 0.0
        %v969 = vmul.f32 %v965, 0.01
        %v970 = vsel %vm968, %v965, %v969
        %v971 = vld [vmem:[%s5] sm:$0x1]
        %v973 = vlaneseq
        %v974 = vshrl.u32 %v973, 7
        %v975 = vsub.s32 0, %v974
        %v976 = vrot.slane %v971, %v975
        %v978 = vmul.f32 %v970, %v976
        %979 = vadd.xlane.f32.xlu0 %v978
        %v980 = vpop.xlane.xlu0 %979
        %v981 = vld [vmem:[#allocation2] sm:$0x1]
        %v983 = vlaneseq
        %v984 = vshrl.u32 %v983, 7
        %v985 = vsub.s32 0, %v984
        %v986 = vrot.slane %v981, %v985
        %v988 = vadd.f32 %v980, %v986
        %v989 = vtanh.pop %v988
        %vm990 = vcmask 7168
        %991 = vst.msk [vmem:[%s325] sm:$0xff] %vm990, %v989
        %p992 = scmp.lt.s32.totalorder %s24, 1
        %s993 = scalar_select %p992, %s24, 1
        %s994 = smul.addr %s993, 8
        %s995 = scalar_lea.vmem %s7, %s994
        // Predicated region
        $region61: #{tpu_custom_call.1} parent=47 // pred_check
          %p996 = pneg %p194
        $region62: #{tpu_custom_call.1} parent=47 // pred_check_branch
          %998 = sbr.rel (%p996) target = $region64
        $region63: #{tpu_custom_call.1} parent=47 // pred_region
          _
        $region64: #{tpu_custom_call.1} parent=47 // pred_fallthru
          _
      $region48: #{tpu_custom_call.1} parent=5 // pred_fallthru
        _
      %p999 = scmp.le.s32.totalorder 2, %s19
      // Predicated region
      $region65: #{tpu_custom_call.1} parent=5 // pred_check
        %p1000 = pneg %p999
      $region66: #{tpu_custom_call.1} parent=5 // pred_check_branch
        %1002 = sbr.rel (%p1000) target = $region68
      $region67: #{tpu_custom_call.1} parent=5 // pred_region
        %s1003 = ssub.s32 %s19, 2
        // Predicated region
        $region69: #{tpu_custom_call.1} parent=67 // pred_check
          %p1004 = pneg %p200
        $region70: #{tpu_custom_call.1} parent=67 // pred_check_branch
          %1006 = sbr.rel (%p1004) target = $region72
        $region71: #{tpu_custom_call.1} parent=67 // pred_region
          %p1007 = scmp.lt.s32.totalorder %s25, 1
          %s1008 = scalar_select %p1007, %s25, 1
          %s1009 = smul.addr %s1008, 8
          %s1010 = scalar_lea.vmem %s7, %s1009
        $region72: #{tpu_custom_call.1} parent=67 // pred_fallthru
          _
      $region68: #{tpu_custom_call.1} parent=5 // pred_fallthru
        _
    $region6: #{tpu_custom_call.1} parent=1 // loop_footer
      %s23 = sadd.s32 1, %s19
    $region7: #{tpu_custom_call.1} parent=1 // loop_footer_branch
      %18 = sbr.rel target = $region3
    $region8: #{tpu_custom_call.1} parent=1 // loop_exit
      _
    %1011 = vsyncpa [#allocation4], 1
    %s1012 = scalar_lea.sflag [#allocation4], 1
    %1013 = vsyncpa %s1012, 1
    %1014 = vsyncpa [#allocation6], 1

</llo_original>
